<compile_context>
chip_gen: v7x
topology: tpu7x:2x2x1
jax: 0.10.0
libtpu: 0.0.40
codegen_flags: <defaults>
</compile_context>

<pallas_src>
import jax
import jax.numpy as jnp
from jax.experimental import pallas as pl
from jax.experimental.pallas import tpu as pltpu
import numpy as np

# ----------------------------- configuration --------------------------------
NUM_GRAPHS = 6            # total_number_of_graphs
STOP_IDX = NUM_GRAPHS     # stop_symbol_indx == total_number_of_graphs
MAX_NODES = 8             # padded node count per graph
FEAT_DIM = 16             # raw node feature dim
HID_DIM = 32              # GNN hidden dim
EMB_DIM = 32              # graph embedding dim (== embedding_dim of the module)
NUM_MP_STEPS = 2          # message-passing rounds
TOT_NODES = NUM_GRAPHS * MAX_NODES
TABLE_ROWS = 8            # G graph rows + 1 stop row, padded to a full sublane tile


# ------------------------------ Pallas kernel --------------------------------
def symbol_gnn_kernel(sym_ref,               # VMEM (N, 1) int32  symbol indices
                      feats_ref,             # VMEM (G*M, FEAT)   stacked node features
                      adj_ref,               # VMEM (G*M, G*M)    block-diagonal adjacency
                      w_in_ref, b_in_ref,    # (FEAT, HID), (1, HID)
                      w_mp_ref, b_mp_ref,    # (HID, 2*HID), (1, HID)   fused [w_msg | w_self]
                      w_ro_ref, b_ro_ref,    # (HID, 2*EMB), (1, 2*EMB) fused [w_gate | w_proj]
                      seg_ref,               # (TABLE_ROWS, G*M)  mask-folded segment-sum matrix
                      stop_pad_ref,          # (TABLE_ROWS, EMB)  zeros except row STOP_IDX = stop emb
                      out_ref):              # (N, EMB)
    x = feats_ref[...]
    adj = adj_ref[...]

    # Hoist all weight/bias loads once; reused inside the unrolled MP loop.
    w_in, b_in = w_in_ref[...], b_in_ref[...]
    w_mp, b_mp = w_mp_ref[...], b_mp_ref[...]
    w_ro, b_ro = w_ro_ref[...], b_ro_ref[...]

    # Input projection over every node of every vocabulary graph at once.
    # No node-mask multiply needed: padded nodes have zero adjacency rows/cols
    # and are excluded from the readout by the mask-folded seg matrix, so they
    # never influence the output (exactly matches the masked reference).
    h = jnp.maximum(
        jnp.dot(x, w_in, preferred_element_type=jnp.float32) + b_in, 0.0)   # (G*M, HID)

    # Message passing.  Fused weight [w_msg | w_self] -> one (G*M, 2H) matmul,
    # then adj @ (h @ w_msg) == (adj @ h) @ w_msg by associativity.
    for _ in range(NUM_MP_STEPS):
        hw = jnp.dot(h, w_mp, preferred_element_type=jnp.float32)           # (G*M, 2H)
        h = jnp.maximum(
            jnp.dot(adj, hw[:, :HID_DIM], preferred_element_type=jnp.float32)
            + hw[:, HID_DIM:] + b_mp, 0.0)                                   # (G*M, HID)

    # Fused gated-sum (GGNN-style) readout.
    rw = jnp.dot(h, w_ro, preferred_element_type=jnp.float32) + b_ro         # (G*M, 2E)
    contrib = jax.nn.sigmoid(rw[:, :EMB_DIM]) * rw[:, EMB_DIM:]              # (G*M, E)

    # Per-graph node sum (mask folded into seg) + stop row -> embedding table.
    table = (jnp.dot(seg_ref[...], contrib, preferred_element_type=jnp.float32)
             + stop_pad_ref[...])                                            # (TABLE_ROWS, E)

    # Per-symbol gather of the table (graph rows 0..G-1, stop row G) as one matmul.
    sym = sym_ref[...]                                                       # (N, 1)
    gcols = jax.lax.broadcasted_iota(jnp.int32, (sym.shape[0], TABLE_ROWS), 1)
    onehot = (gcols == sym).astype(jnp.float32)                              # (N, TABLE_ROWS)
    out_ref[...] = jnp.dot(onehot, table, preferred_element_type=jnp.float32)


# ----------------------- one-time vocabulary packing --------------------------
def pack_vocab(feats, adj, mask3, params):
    """Symbol-independent packing.  Call ONCE per vocabulary/parameter set and
    reuse the result for every forward call."""
    (w_in, b_in, w_msg, w_self, b_mp, w_gate, b_gate, w_proj, b_proj, stop_emb) = params

    feats_s = feats.reshape(TOT_NODES, FEAT_DIM)
    mask_flat = mask3.reshape(TOT_NODES).astype(jnp.float32)

    # Block-diagonal adjacency: one MXU push propagates all vocab graphs at once.
    # (adj is already zero at padded rows/cols, which makes dropping in-kernel
    # node masking exact.)
    adj_bd = jnp.einsum('gh,gij->gihj',
                        jnp.eye(NUM_GRAPHS, dtype=adj.dtype), adj)
    adj_bd = adj_bd.reshape(TOT_NODES, TOT_NODES)

    # Fused weights.
    w_mp_f = jnp.concatenate([w_msg, w_self], axis=1)        # (H, 2H)
    w_ro_f = jnp.concatenate([w_gate, w_proj], axis=1)       # (H, 2E)
    b_ro_f = jnp.concatenate([b_gate, b_proj], axis=1)       # (1, 2E)

    # Mask-folded segment-sum matrix: row g selects (and mask-weights) the
    # MAX_NODES node columns of graph g; rows >= NUM_GRAPHS are zero.
    rows = np.arange(TABLE_ROWS)[:, None]
    cols = np.arange(TOT_NODES)[None, :]
    seg_np = ((cols >= rows * MAX_NODES) & (cols < (rows + 1) * MAX_NODES)
              & (rows < NUM_GRAPHS)).astype(np.float32)       # (TABLE_ROWS, G*M)
    seg = jnp.asarray(seg_np) * mask_flat[None, :]

    # Stop embedding placed at row STOP_IDX of the table; other rows zero.
    stop_pad = jnp.zeros((TABLE_ROWS, EMB_DIM), jnp.float32)
    stop_pad = stop_pad.at[STOP_IDX].set(stop_emb.reshape(EMB_DIM))

    return (feats_s, adj_bd, w_in, b_in, w_mp_f, b_mp, w_ro_f, b_ro_f, seg, stop_pad)


# ------------------------------ per-call wrapper ------------------------------
@jax.jit
def symbol_gnn_embedder(symbols, packed):
    """symbols: int32 [N]; packed: output of pack_vocab; returns float32 [N, EMB_DIM]."""
    (feats_s, adj_bd, w_in, b_in, w_mp_f, b_mp, w_ro_f, b_ro_f, seg, stop_pad) = packed
    N = symbols.shape[0]
    sym2d = symbols.astype(jnp.int32).reshape(N, 1)

    vmem_full = pl.BlockSpec(memory_space=pltpu.MemorySpace.VMEM)

    return pl.pallas_call(
        symbol_gnn_kernel,
        out_shape=jax.ShapeDtypeStruct((N, EMB_DIM), jnp.float32),
        in_specs=[vmem_full] * 11,
        out_specs=vmem_full,
    )(sym2d, feats_s, adj_bd,
      w_in, b_in, w_mp_f, b_mp, w_ro_f, b_ro_f, seg, stop_pad)


# --------------------------- pure-JAX reference -------------------------------
def ref_embedder(symbols, feats, adj, mask3, params):
    (w_in, b_in, w_msg, w_self, b_mp, w_gate, b_gate, w_proj, b_proj, stop_emb) = params
    g = jnp.minimum(symbols, NUM_GRAPHS - 1)
    h, A, m = feats[g], adj[g], mask3[g]
    h = jnp.maximum(h @ w_in + b_in, 0.0) * m
    for _ in range(NUM_MP_STEPS):
        msg = A @ h
        h = jnp.maximum(msg @ w_msg + h @ w_self + b_mp, 0.0) * m
    gate = jax.nn.sigmoid(h @ w_gate + b_gate)
    proj = h @ w_proj + b_proj
    g_emb = jnp.sum(gate * proj * m, axis=1)
    return jnp.where((symbols == STOP_IDX)[:, None], stop_emb, g_emb)


# --------------------------------- main ---------------------------------------
if __name__ == "__main__":
    key = jax.random.PRNGKey(0)
    ks = jax.random.split(key, 16)

    # deterministic synthetic graph vocabulary
    n_nodes = jnp.array([3, 5, 8, 4, 6, 7], dtype=jnp.int32)           # per-graph node counts
    mask = (jnp.arange(MAX_NODES)[None, :] < n_nodes[:, None]).astype(jnp.float32)
    feats = jax.random.normal(ks[0], (NUM_GRAPHS, MAX_NODES, FEAT_DIM), jnp.float32)
    feats = feats * mask[:, :, None]
    a = (jax.random.uniform(ks[1], (NUM_GRAPHS, MAX_NODES, MAX_NODES)) > 0.5).astype(jnp.float32)
    adj = a * mask[:, :, None] * mask[:, None, :]
    adj = jnp.maximum(adj, jnp.transpose(adj, (0, 2, 1)))
    mask3 = mask[:, :, None]

    # deterministic parameter init (uniform, PyTorch-style fan-in bound)
    def u(k, shape, fan_in):
        b = 1.0 / np.sqrt(fan_in)
        return jax.random.uniform(k, shape, jnp.float32, -b, b)

    params = (
        u(ks[2], (FEAT_DIM, HID_DIM), FEAT_DIM),   # w_in
        u(ks[3], (1, HID_DIM), FEAT_DIM),          # b_in
        u(ks[4], (HID_DIM, HID_DIM), HID_DIM),     # w_msg
        u(ks[5], (HID_DIM, HID_DIM), HID_DIM),     # w_self
        u(ks[6], (1, HID_DIM), HID_DIM),           # b_mp
        u(ks[7], (HID_DIM, EMB_DIM), HID_DIM),     # w_gate
        u(ks[8], (1, EMB_DIM), HID_DIM),           # b_gate
        u(ks[9], (HID_DIM, EMB_DIM), HID_DIM),     # w_proj
        u(ks[10], (1, EMB_DIM), HID_DIM),          # b_proj
        u(ks[11], (1, EMB_DIM), EMB_DIM),          # stop_embedding (bound = 1/sqrt(emb_dim))
    )

    # One-time vocabulary packing (hoisted off the per-call path).
    packed = jax.tree_util.tree_map(jax.block_until_ready, pack_vocab(feats, adj, mask3, params))

    # symbol sequence: mix of graph indices and the stop symbol (== NUM_GRAPHS)
    symbols = jnp.array([0, 3, STOP_IDX, 2, STOP_IDX, 5, 1, 4], dtype=jnp.int32)

    out = symbol_gnn_embedder(symbols, packed)
    out = jax.block_until_ready(out)

    ref = ref_embedder(symbols, feats, adj, mask3, params)
    np.testing.assert_allclose(np.asarray(out), np.asarray(ref), rtol=1e-4, atol=1e-4)

    print("KERNEL_OK")
</pallas_src>

<mosaic_0001>
module attributes {stable_mosaic.version = 11 : i64} {
  func.func @symbol_gnn_kernel(%arg0: memref<8x1xi32, #tpu.memory_space<vmem>>, %arg1: memref<48x16xf32, #tpu.memory_space<vmem>>, %arg2: memref<48x48xf32, #tpu.memory_space<vmem>>, %arg3: memref<16x32xf32, #tpu.memory_space<vmem>>, %arg4: memref<1x32xf32, #tpu.memory_space<vmem>>, %arg5: memref<32x64xf32, #tpu.memory_space<vmem>>, %arg6: memref<1x32xf32, #tpu.memory_space<vmem>>, %arg7: memref<32x64xf32, #tpu.memory_space<vmem>>, %arg8: memref<1x64xf32, #tpu.memory_space<vmem>>, %arg9: memref<8x48xf32, #tpu.memory_space<vmem>>, %arg10: memref<8x32xf32, #tpu.memory_space<vmem>>, %arg11: memref<8x32xf32, #tpu.memory_space<vmem>>) attributes {dimension_semantics = [], scalar_prefetch = 0 : i64, scratch_operands = 0 : i64, tpu.core_type = #tpu.core_type<tc>} {
    %c0 = arith.constant 0 : index
    %c0_0 = arith.constant 0 : index
    %0 = vector.load %arg1[%c0, %c0_0] : memref<48x16xf32, #tpu.memory_space<vmem>>, vector<48x16xf32>
    %c0_1 = arith.constant 0 : index
    %c0_2 = arith.constant 0 : index
    %1 = vector.load %arg2[%c0_1, %c0_2] : memref<48x48xf32, #tpu.memory_space<vmem>>, vector<48x48xf32>
    %c0_3 = arith.constant 0 : index
    %c0_4 = arith.constant 0 : index
    %2 = vector.load %arg3[%c0_3, %c0_4] : memref<16x32xf32, #tpu.memory_space<vmem>>, vector<16x32xf32>
    %c0_5 = arith.constant 0 : index
    %c0_6 = arith.constant 0 : index
    %3 = vector.load %arg4[%c0_5, %c0_6] : memref<1x32xf32, #tpu.memory_space<vmem>>, vector<1x32xf32>
    %c0_7 = arith.constant 0 : index
    %c0_8 = arith.constant 0 : index
    %4 = vector.load %arg5[%c0_7, %c0_8] : memref<32x64xf32, #tpu.memory_space<vmem>>, vector<32x64xf32>
    %c0_9 = arith.constant 0 : index
    %c0_10 = arith.constant 0 : index
    %5 = vector.load %arg6[%c0_9, %c0_10] : memref<1x32xf32, #tpu.memory_space<vmem>>, vector<1x32xf32>
    %c0_11 = arith.constant 0 : index
    %c0_12 = arith.constant 0 : index
    %6 = vector.load %arg7[%c0_11, %c0_12] : memref<32x64xf32, #tpu.memory_space<vmem>>, vector<32x64xf32>
    %c0_13 = arith.constant 0 : index
    %c0_14 = arith.constant 0 : index
    %7 = vector.load %arg8[%c0_13, %c0_14] : memref<1x64xf32, #tpu.memory_space<vmem>>, vector<1x64xf32>
    %cst = arith.constant dense<0.000000e+00> : vector<48x32xf32>
    %8 = tpu.matmul %0, %2, %cst {dimension_numbers = #tpu.dot_dimension_numbers<[1], [0], [0], [1], [0, 0, 1, 1], [], []>} : vector<48x16xf32>, vector<16x32xf32>, vector<48x32xf32> -> vector<48x32xf32>
    %9 = vector.broadcast %3 : vector<1x32xf32> to vector<48x32xf32>
    %10 = arith.addf %8, %9 : vector<48x32xf32>
    %cst_15 = arith.constant 0.000000e+00 : f32
    %11 = vector.broadcast %cst_15 : f32 to vector<48x32xf32>
    %12 = arith.maximumf %10, %11 : vector<48x32xf32>
    %cst_16 = arith.constant dense<0.000000e+00> : vector<48x64xf32>
    %13 = tpu.matmul %12, %4, %cst_16 {dimension_numbers = #tpu.dot_dimension_numbers<[1], [0], [0], [1], [0, 0, 1, 1], [], []>} : vector<48x32xf32>, vector<32x64xf32>, vector<48x64xf32> -> vector<48x64xf32>
    %14 = vector.extract_strided_slice %13 {offsets = [0, 0], sizes = [48, 32], strides = [1, 1]} : vector<48x64xf32> to vector<48x32xf32>
    %cst_17 = arith.constant dense<0.000000e+00> : vector<48x32xf32>
    %15 = tpu.matmul %1, %14, %cst_17 {dimension_numbers = #tpu.dot_dimension_numbers<[1], [0], [0], [1], [0, 0, 1, 1], [], []>} : vector<48x48xf32>, vector<48x32xf32>, vector<48x32xf32> -> vector<48x32xf32>
    %16 = vector.extract_strided_slice %13 {offsets = [0, 32], sizes = [48, 32], strides = [1, 1]} : vector<48x64xf32> to vector<48x32xf32>
    %17 = arith.addf %15, %16 : vector<48x32xf32>
    %18 = vector.broadcast %5 : vector<1x32xf32> to vector<48x32xf32>
    %19 = arith.addf %17, %18 : vector<48x32xf32>
    %cst_18 = arith.constant 0.000000e+00 : f32
    %20 = vector.broadcast %cst_18 : f32 to vector<48x32xf32>
    %21 = arith.maximumf %19, %20 : vector<48x32xf32>
    %cst_19 = arith.constant dense<0.000000e+00> : vector<48x64xf32>
    %22 = tpu.matmul %21, %4, %cst_19 {dimension_numbers = #tpu.dot_dimension_numbers<[1], [0], [0], [1], [0, 0, 1, 1], [], []>} : vector<48x32xf32>, vector<32x64xf32>, vector<48x64xf32> -> vector<48x64xf32>
    %23 = vector.extract_strided_slice %22 {offsets = [0, 0], sizes = [48, 32], strides = [1, 1]} : vector<48x64xf32> to vector<48x32xf32>
    %cst_20 = arith.constant dense<0.000000e+00> : vector<48x32xf32>
    %24 = tpu.matmul %1, %23, %cst_20 {dimension_numbers = #tpu.dot_dimension_numbers<[1], [0], [0], [1], [0, 0, 1, 1], [], []>} : vector<48x48xf32>, vector<48x32xf32>, vector<48x32xf32> -> vector<48x32xf32>
    %25 = vector.extract_strided_slice %22 {offsets = [0, 32], sizes = [48, 32], strides = [1, 1]} : vector<48x64xf32> to vector<48x32xf32>
    %26 = arith.addf %24, %25 : vector<48x32xf32>
    %27 = vector.broadcast %5 : vector<1x32xf32> to vector<48x32xf32>
    %28 = arith.addf %26, %27 : vector<48x32xf32>
    %cst_21 = arith.constant 0.000000e+00 : f32
    %29 = vector.broadcast %cst_21 : f32 to vector<48x32xf32>
    %30 = arith.maximumf %28, %29 : vector<48x32xf32>
    %cst_22 = arith.constant dense<0.000000e+00> : vector<48x64xf32>
    %31 = tpu.matmul %30, %6, %cst_22 {dimension_numbers = #tpu.dot_dimension_numbers<[1], [0], [0], [1], [0, 0, 1, 1], [], []>} : vector<48x32xf32>, vector<32x64xf32>, vector<48x64xf32> -> vector<48x64xf32>
    %32 = vector.broadcast %7 : vector<1x64xf32> to vector<48x64xf32>
    %33 = arith.addf %31, %32 : vector<48x64xf32>
    %34 = vector.extract_strided_slice %33 {offsets = [0, 0], sizes = [48, 32], strides = [1, 1]} : vector<48x64xf32> to vector<48x32xf32>
    %35 = arith.negf %34 : vector<48x32xf32>
    %36 = math.exp %35 : vector<48x32xf32>
    %cst_23 = arith.constant 1.000000e+00 : f32
    %37 = vector.broadcast %cst_23 : f32 to vector<48x32xf32>
    %38 = arith.addf %37, %36 : vector<48x32xf32>
    %39 = arith.divf %37, %38 : vector<48x32xf32>
    %40 = vector.extract_strided_slice %33 {offsets = [0, 32], sizes = [48, 32], strides = [1, 1]} : vector<48x64xf32> to vector<48x32xf32>
    %41 = arith.mulf %39, %40 : vector<48x32xf32>
    %c0_24 = arith.constant 0 : index
    %c0_25 = arith.constant 0 : index
    %42 = vector.load %arg9[%c0_24, %c0_25] : memref<8x48xf32, #tpu.memory_space<vmem>>, vector<8x48xf32>
    %cst_26 = arith.constant dense<0.000000e+00> : vector<8x32xf32>
    %43 = tpu.matmul %42, %41, %cst_26 {dimension_numbers = #tpu.dot_dimension_numbers<[1], [0], [0], [1], [0, 0, 1, 1], [], []>} : vector<8x48xf32>, vector<48x32xf32>, vector<8x32xf32> -> vector<8x32xf32>
    %c0_27 = arith.constant 0 : index
    %c0_28 = arith.constant 0 : index
    %44 = vector.load %arg10[%c0_27, %c0_28] : memref<8x32xf32, #tpu.memory_space<vmem>>, vector<8x32xf32>
    %45 = arith.addf %43, %44 : vector<8x32xf32>
    %c0_29 = arith.constant 0 : index
    %c0_30 = arith.constant 0 : index
    %46 = vector.load %arg0[%c0_29, %c0_30] : memref<8x1xi32, #tpu.memory_space<vmem>>, vector<8x1xi32>
    %47 = tpu.iota {dimensions = array<i32: 1>} : vector<8x8xi32>
    %48 = vector.broadcast %46 : vector<8x1xi32> to vector<8x8xi32>
    %49 = arith.cmpi eq, %47, %48 : vector<8x8xi32>
    %50 = arith.extui %49 : vector<8x8xi1> to vector<8x8xi32>
    %51 = arith.sitofp %50 : vector<8x8xi32> to vector<8x8xf32>
    %cst_31 = arith.constant dense<0.000000e+00> : vector<8x32xf32>
    %52 = tpu.matmul %51, %45, %cst_31 {dimension_numbers = #tpu.dot_dimension_numbers<[1], [0], [0], [1], [0, 0, 1, 1], [], []>} : vector<8x8xf32>, vector<8x32xf32>, vector<8x32xf32> -> vector<8x32xf32>
    %c0_32 = arith.constant 0 : index
    %c0_33 = arith.constant 0 : index
    %53 = vector.load %arg11[%c0_32, %c0_33] : memref<8x32xf32, #tpu.memory_space<vmem>>, vector<8x32xf32>
    tpu.vector_store %arg11[%c0_32, %c0_33], %52 {strides = array<i32>} : memref<8x32xf32, #tpu.memory_space<vmem>>, vector<8x32xf32>,
    return
  }
}

</mosaic_0001>

<llo_original>
// kernel: symbol_gnn_embedder.1
$region0: #{symbol_gnn_embedder.1}
  #allocation0 [shape = 'u32[]', space=smem, size = 0x4, offset = 0x4, fixed_abs, tag = 'smem constant byte address 0x4 - core index']
  #allocation1 [shape = 'u32[144,128]{1,0:T(1,128)}', space=vmem, size = 0x12000, scoped, tag = 'internal scratch']
  %s0 = inlined_call_operand.vmem [shape: s32[8,1], index: 0, kind: input, shape index: {}]
  %s1 = inlined_call_operand.vmem [shape: f32[48,16], index: 1, kind: input, shape index: {}]
  %s2 = inlined_call_operand.vmem [shape: f32[48,48], index: 2, kind: input, shape index: {}]
  %s3 = inlined_call_operand.hbm [shape: f32[16,32], index: 3, kind: input, shape index: {}]
  %s4 = inlined_call_operand.vmem [shape: f32[1,32], index: 4, kind: input, shape index: {}]
  %s5 = inlined_call_operand.vmem [shape: f32[32,64], index: 5, kind: input, shape index: {}]
  %s6 = inlined_call_operand.vmem [shape: f32[1,32], index: 6, kind: input, shape index: {}]
  %s7 = inlined_call_operand.hbm [shape: f32[32,64], index: 7, kind: input, shape index: {}]
  %s8 = inlined_call_operand.vmem [shape: f32[1,64], index: 8, kind: input, shape index: {}]
  %s9 = inlined_call_operand.vmem [shape: f32[8,48], index: 9, kind: input, shape index: {}]
  %s10 = inlined_call_operand.vmem [shape: f32[8,32], index: 10, kind: input, shape index: {}]
  %s11 = inlined_call_operand.hbm [shape: f32[8,32], index: 11, kind: output, shape index: {}]
  %s12 = sld [smem:[#allocation0]]
  $region62: #{symbol_gnn_embedder.1} parent=0
    _
  %s14 = ssub.s32 1, %s12
  %s15 = scalar_select 0, %s14, %s12
  $region1: #{symbol_gnn_embedder.1} parent=0
    #allocation2 [shape = 'u8[8192]{0}', space=vmem, size = 0x2000, scoped, tag = 'input window, operand 3, single buffered']
    #allocation3 [shape = 's32[1]{0}', space=sflag, size = 0x4, scoped, tag = 'scoped memory for symbol_gnn_embedder.1']
    #allocation4 [shape = 's32[1]{0}', space=sflag, size = 0x4, scoped, tag = 'scoped memory for symbol_gnn_embedder.1']
    #allocation5 [shape = 'u8[16384]{0}', space=vmem, size = 0x4000, scoped, tag = 'input window, operand 7, single buffered']
    #allocation6 [shape = 's32[1]{0}', space=sflag, size = 0x4, scoped, tag = 'scoped memory for symbol_gnn_embedder.1']
    #allocation7 [shape = 'u8[4096]{0}', space=vmem, size = 0x1000, scoped, tag = 'output window, operand 0, single buffered']
    %16 = vsyncpa [#allocation3], 0
    %17 = vsyncpa [#allocation6], 0
    %18 = vsyncpa [#allocation4], 0
    // Predicated region
    $region2: #{symbol_gnn_embedder.1} parent=1 // pred_check
      _
    $region3: #{symbol_gnn_embedder.1} parent=1 // pred_check_branch
      %20 = sbr.rel (0) target = $region5
    $region4: #{symbol_gnn_embedder.1} parent=1 // pred_region
      _
    $region5: #{symbol_gnn_embedder.1} parent=1 // pred_fallthru
      _
    // Predicated region
    $region6: #{symbol_gnn_embedder.1} parent=1 // pred_check
      _
    $region7: #{symbol_gnn_embedder.1} parent=1 // pred_check_branch
      %22 = sbr.rel (0) target = $region9
    $region8: #{symbol_gnn_embedder.1} parent=1 // pred_region
      _
    $region9: #{symbol_gnn_embedder.1} parent=1 // pred_fallthru
      _
    // Predicated region
    $region10: #{symbol_gnn_embedder.1} parent=1 // pred_check
      _
    $region11: #{symbol_gnn_embedder.1} parent=1 // pred_check_branch
      %24 = sbr.rel (0) target = $region13
    $region12: #{symbol_gnn_embedder.1} parent=1 // pred_region
      _
    $region13: #{symbol_gnn_embedder.1} parent=1 // pred_fallthru
      _
    // Predicated region
    $region14: #{symbol_gnn_embedder.1} parent=1 // pred_check
      _
    $region15: #{symbol_gnn_embedder.1} parent=1 // pred_check_branch
      %26 = sbr.rel (0) target = $region17
    $region16: #{symbol_gnn_embedder.1} parent=1 // pred_region
      %s28 = ssub.s32 256, 256
      %29 = vsyncadd [#allocation3], %s28
      %s30 = sshll.u32 [#allocation2], 4
      %s31 = int_to_ptr.vmem [resolvable:$true] %s30
      %36 = dma.hbm_to_vmem [thread:$0]  %s3, 256, %s31, [#allocation3], 128, 128, 8
    $region17: #{symbol_gnn_embedder.1} parent=1 // pred_fallthru
      _
    // Predicated region
    $region18: #{symbol_gnn_embedder.1} parent=1 // pred_check
      _
    $region19: #{symbol_gnn_embedder.1} parent=1 // pred_check_branch
      %38 = sbr.rel (0) target = $region21
    $region20: #{symbol_gnn_embedder.1} parent=1 // pred_region
      _
    $region21: #{symbol_gnn_embedder.1} parent=1 // pred_fallthru
      _
    // Predicated region
    $region22: #{symbol_gnn_embedder.1} parent=1 // pred_check
      _
    $region23: #{symbol_gnn_embedder.1} parent=1 // pred_check_branch
      %40 = sbr.rel (0) target = $region25
    $region24: #{symbol_gnn_embedder.1} parent=1 // pred_region
      _
    $region25: #{symbol_gnn_embedder.1} parent=1 // pred_fallthru
      _
    // Predicated region
    $region26: #{symbol_gnn_embedder.1} parent=1 // pred_check
      _
    $region27: #{symbol_gnn_embedder.1} parent=1 // pred_check_branch
      %42 = sbr.rel (0) target = $region29
    $region28: #{symbol_gnn_embedder.1} parent=1 // pred_region
      _
    $region29: #{symbol_gnn_embedder.1} parent=1 // pred_fallthru
      _
    // Predicated region
    $region30: #{symbol_gnn_embedder.1} parent=1 // pred_check
      _
    $region31: #{symbol_gnn_embedder.1} parent=1 // pred_check_branch
      %44 = sbr.rel (0) target = $region33
    $region32: #{symbol_gnn_embedder.1} parent=1 // pred_region
      %s46 = ssub.s32 512, 512
      %47 = vsyncadd [#allocation6], %s46
      %s48 = sshll.u32 [#allocation5], 4
      %s49 = int_to_ptr.vmem [resolvable:$true] %s48
      %54 = dma.hbm_to_vmem [thread:$0]  %s7, 512, %s49, [#allocation6], 128, 128, 8
    $region33: #{symbol_gnn_embedder.1} parent=1 // pred_fallthru
      _
    // Predicated region
    $region34: #{symbol_gnn_embedder.1} parent=1 // pred_check
      _
    $region35: #{symbol_gnn_embedder.1} parent=1 // pred_check_branch
      %56 = sbr.rel (0) target = $region37
    $region36: #{symbol_gnn_embedder.1} parent=1 // pred_region
      _
    $region37: #{symbol_gnn_embedder.1} parent=1 // pred_fallthru
      _
    // Predicated region
    $region38: #{symbol_gnn_embedder.1} parent=1 // pred_check
      _
    $region39: #{symbol_gnn_embedder.1} parent=1 // pred_check_branch
      %58 = sbr.rel (0) target = $region41
    $region40: #{symbol_gnn_embedder.1} parent=1 // pred_region
      _
    $region41: #{symbol_gnn_embedder.1} parent=1 // pred_fallthru
      _
    // Predicated region
    $region42: #{symbol_gnn_embedder.1} parent=1 // pred_check
      _
    $region43: #{symbol_gnn_embedder.1} parent=1 // pred_check_branch
      %60 = sbr.rel (0) target = $region45
    $region44: #{symbol_gnn_embedder.1} parent=1 // pred_region
      _
    $region45: #{symbol_gnn_embedder.1} parent=1 // pred_fallthru
      _
    // Predicated region
    $region46: #{symbol_gnn_embedder.1} parent=1 // pred_check
      _
    $region47: #{symbol_gnn_embedder.1} parent=1 // pred_check_branch
      %62 = sbr.rel (0) target = $region49
    $region48: #{symbol_gnn_embedder.1} parent=1 // pred_region
      %63 = dma.done [#allocation3], 256
    $region49: #{symbol_gnn_embedder.1} parent=1 // pred_fallthru
      _
    // Predicated region
    $region50: #{symbol_gnn_embedder.1} parent=1 // pred_check
      _
    $region51: #{symbol_gnn_embedder.1} parent=1 // pred_check_branch
      %65 = sbr.rel (0) target = $region53
    $region52: #{symbol_gnn_embedder.1} parent=1 // pred_region
      %66 = dma.done [#allocation6], 512
    $region53: #{symbol_gnn_embedder.1} parent=1 // pred_fallthru
      _
    %v67 = vld [vmem:[%s1] sm:$0xff]
    %v68 = vld [vmem:[%s1 + $0x8] sm:$0xff]
    %v69 = vld [vmem:[%s1 + $0x10] sm:$0xff]
    %v70 = vld [vmem:[%s1 + $0x18] sm:$0xff]
    %v71 = vld [vmem:[%s1 + $0x20] sm:$0xff]
    %v72 = vld [vmem:[%s1 + $0x28] sm:$0xff]
    %v73 = vld [vmem:[%s2] sm:$0xff]
    %v74 = vld [vmem:[%s2 + $0x8] sm:$0xff]
    %v75 = vld [vmem:[%s2 + $0x10] sm:$0xff]
    %v76 = vld [vmem:[%s2 + $0x18] sm:$0xff]
    %v77 = vld [vmem:[%s2 + $0x20] sm:$0xff]
    %v78 = vld [vmem:[%s2 + $0x28] sm:$0xff]
    %v79 = vld [vmem:[#allocation2] sm:$0xff]
    %v80 = vld [vmem:[#allocation2 + $0x8] sm:$0xff]
    %v81 = vld [vmem:[%s4] sm:$0x1]
    %v82 = vld [vmem:[%s5] sm:$0xff]
    %v83 = vld [vmem:[%s5 + $0x8] sm:$0xff]
    %v84 = vld [vmem:[%s5 + $0x10] sm:$0xff]
    %v85 = vld [vmem:[%s5 + $0x18] sm:$0xff]
    %v86 = vld [vmem:[%s6] sm:$0x1]
    %v87 = vld [vmem:[#allocation5] sm:$0xff]
    %v88 = vld [vmem:[#allocation5 + $0x8] sm:$0xff]
    %v89 = vld [vmem:[#allocation5 + $0x10] sm:$0xff]
    %v90 = vld [vmem:[#allocation5 + $0x18] sm:$0xff]
    %v91 = vld [vmem:[%s8] sm:$0x1]
    %v93 = vlaneseq
    %v94 = vshrl.u32 %v93, 7
    %v95 = vsub.s32 0, %v94
    %v96 = vrot.slane %v81, %v95
    %vm98 = vcmask 130048
    %v100 = vsel %vm98, %v67, 0
    %v103 = vsel %vm98, %v68, 0
    %v106 = vsel %vm98, %v69, 0
    %v109 = vsel %vm98, %v70, 0
    %v112 = vsel %vm98, %v71, 0
    %v115 = vsel %vm98, %v72, 0
    %117 = vmatprep.subr.mxu0 0.0
    %118 = vmatpush1.msra.mxu0 %v79
    %119 = vmatprep.subr.mxu0 0.0
    %120 = vmatpush1.msra.mxu0 %v80
    %121 = vmatprep.subr.mxu0 0.0
    %122 = vmatpush1.msra.mxu0 0.0
    %123 = vmatprep.subr.mxu0 0.0
    %124 = vmatpush1.msra.mxu0 0.0
    %125 = vmatprep.subr.mxu0 0.0
    %126 = vmatpush1.msra.mxu0 0.0
    %127 = vmatprep.subr.mxu0 0.0
    %128 = vmatpush1.msra.mxu0 0.0
    %129 = vmatprep.subr.mxu0 0.0
    %130 = vmatpush1.msra.mxu0 0.0
    %131 = vmatprep.subr.mxu0 0.0
    %132 = vmatpush1.msra.mxu0 0.0
    %133 = vmatprep.subr.mxu0 0.0
    %134 = vmatpush1.msra.mxu0 0.0
    %135 = vmatprep.subr.mxu0 0.0
    %136 = vmatpush1.msra.mxu0 0.0
    %137 = vmatprep.subr.mxu0 0.0
    %138 = vmatpush1.msra.mxu0 0.0
    %139 = vmatprep.subr.mxu0 0.0
    %140 = vmatpush1.msra.mxu0 0.0
    %141 = vmatprep.subr.mxu0 0.0
    %142 = vmatpush1.msra.mxu0 0.0
    %143 = vmatprep.subr.mxu0 0.0
    %144 = vmatpush1.msra.mxu0 0.0
    %145 = vmatprep.subr.mxu0 0.0
    %146 = vmatpush1.msra.mxu0 0.0
    %147 = vmatprep.subr.mxu0 0.0
    %148 = vmatpush1.msra.mxu0 0.0
    %149 = vmatprep.subr.mxu0 0.0
    %150 = vmatpush1.msra.mxu0 0.0
    %151 = vmatprep.subr.mxu0 0.0
    %152 = vmatpush1.msra.mxu0 0.0
    %153 = vmatprep.subr.mxu0 0.0
    %154 = vmatpush1.msra.mxu0 0.0
    %155 = vmatprep.subr.mxu0 0.0
    %156 = vmatpush1.msra.mxu0 0.0
    %157 = vmatprep.subr.mxu0 0.0
    %158 = vmatpush1.msra.mxu0 0.0
    %159 = vmatprep.subr.mxu0 0.0
    %160 = vmatpush1.msra.mxu0 0.0
    %161 = vmatprep.subr.mxu0 0.0
    %162 = vmatpush1.msra.mxu0 0.0
    %163 = vmatprep.subr.mxu0 0.0
    %164 = vmatpush1.msra.mxu0 0.0
    %165 = vmatprep.subr.mxu0 0.0
    %166 = vmatpush1.msra.mxu0 0.0
    %167 = vmatprep.subr.mxu0 0.0
    %168 = vmatpush1.msra.mxu0 0.0
    %169 = vmatprep.subr.mxu0 0.0
    %170 = vmatpush1.msra.mxu0 0.0
    %171 = vmatprep.subr.mxu0 0.0
    %172 = vmatpush1.msra.mxu0 0.0
    %173 = vmatprep.subr.mxu0 0.0
    %174 = vmatpush1.msra.mxu0 0.0
    %175 = vmatprep.subr.mxu0 0.0
    %176 = vmatpush1.msra.mxu0 0.0
    %177 = vmatprep.subr.mxu0 0.0
    %178 = vmatpush1.msra.mxu0 0.0
    %179 = vmatprep.subr.mxu0 0.0
    %180 = vmatpush1.msra.mxu0 0.0
    %181 = vmatprep.mubr.f32.mxu0 0.0
    %182 = vmatmul.mubr.f32.gmra.mrb[0].mxu0 %v100
    %v183 = vpop.f32.mrb[0].mxu0
    %v184 = vadd.f32 %v96, %v183
    %v185 = vpop.f32.mrb[0].mxu0
    %186 = vmatprep.mubr.f32.mxu0 0.0
    %187 = vmatmul.mubr.f32.gmra.mrb[0].mxu0 %v103
    %v188 = vpop.f32.mrb[0].mxu0
    %v189 = vadd.f32 %v96, %v188
    %v190 = vpop.f32.mrb[0].mxu0
    %191 = vmatprep.mubr.f32.mxu0 0.0
    %192 = vmatmul.mubr.f32.gmra.mrb[0].mxu0 %v106
    %v193 = vpop.f32.mrb[0].mxu0
    %v194 = vadd.f32 %v96, %v193
    %v195 = vpop.f32.mrb[0].mxu0
    %196 = vmatprep.mubr.f32.mxu0 0.0
    %197 = vmatmul.mubr.f32.gmra.mrb[0].mxu0 %v109
    %v198 = vpop.f32.mrb[0].mxu0
    %v199 = vadd.f32 %v96, %v198
    %v200 = vpop.f32.mrb[0].mxu0
    %201 = vmatprep.mubr.f32.mxu0 0.0
    %202 = vmatmul.mubr.f32.gmra.mrb[0].mxu0 %v112
    %v203 = vpop.f32.mrb[0].mxu0
    %v204 = vadd.f32 %v96, %v203
    %v205 = vpop.f32.mrb[0].mxu0
    %206 = vmatprep.mubr.f32.mxu0 0.0
    %207 = vmatmul.mubr.f32.gmra.mrb[0].mxu0 %v115
    %v208 = vpop.f32.mrb[0].mxu0
    %v209 = vadd.f32 %v96, %v208
    %v210 = vpop.f32.mrb[0].mxu0
    %211 = vdwg.mxu0
    %v212 = vmax.f32 %v184, 0.0
    %v213 = vmax.f32 %v189, 0.0
    %v214 = vmax.f32 %v194, 0.0
    %v215 = vmax.f32 %v199, 0.0
    %v216 = vmax.f32 %v204, 0.0
    %v217 = vmax.f32 %v209, 0.0
    %vm218 = vcmask 261120
    %v220 = vsel %vm218, %v212, 0
    %v223 = vsel %vm218, %v213, 0
    %v226 = vsel %vm218, %v214, 0
    %v229 = vsel %vm218, %v215, 0
    %v232 = vsel %vm218, %v216, 0
    %v235 = vsel %vm218, %v217, 0
    %237 = vmatprep.subr.mxu0 0.0
    %238 = vmatpush1.msra.mxu0 %v82
    %239 = vmatprep.subr.mxu0 0.0
    %240 = vmatpush1.msra.mxu0 %v83
    %241 = vmatprep.subr.mxu0 0.0
    %242 = vmatpush1.msra.mxu0 %v84
    %243 = vmatprep.subr.mxu0 0.0
    %244 = vmatpush1.msra.mxu0 %v85
    %245 = vmatprep.subr.mxu0 0.0
    %246 = vmatpush1.msra.mxu0 0.0
    %247 = vmatprep.subr.mxu0 0.0
    %248 = vmatpush1.msra.mxu0 0.0
    %249 = vmatprep.subr.mxu0 0.0
    %250 = vmatpush1.msra.mxu0 0.0
    %251 = vmatprep.subr.mxu0 0.0
    %252 = vmatpush1.msra.mxu0 0.0
    %253 = vmatprep.subr.mxu0 0.0
    %254 = vmatpush1.msra.mxu0 0.0
    %255 = vmatprep.subr.mxu0 0.0
    %256 = vmatpush1.msra.mxu0 0.0
    %257 = vmatprep.subr.mxu0 0.0
    %258 = vmatpush1.msra.mxu0 0.0
    %259 = vmatprep.subr.mxu0 0.0
    %260 = vmatpush1.msra.mxu0 0.0
    %261 = vmatprep.subr.mxu0 0.0
    %262 = vmatpush1.msra.mxu0 0.0
    %263 = vmatprep.subr.mxu0 0.0
    %264 = vmatpush1.msra.mxu0 0.0
    %265 = vmatprep.subr.mxu0 0.0
    %266 = vmatpush1.msra.mxu0 0.0
    %267 = vmatprep.subr.mxu0 0.0
    %268 = vmatpush1.msra.mxu0 0.0
    %269 = vmatprep.subr.mxu0 0.0
    %270 = vmatpush1.msra.mxu0 0.0
    %271 = vmatprep.subr.mxu0 0.0
    %272 = vmatpush1.msra.mxu0 0.0
    %273 = vmatprep.subr.mxu0 0.0
    %274 = vmatpush1.msra.mxu0 0.0
    %275 = vmatprep.subr.mxu0 0.0
    %276 = vmatpush1.msra.mxu0 0.0
    %277 = vmatprep.subr.mxu0 0.0
    %278 = vmatpush1.msra.mxu0 0.0
    %279 = vmatprep.subr.mxu0 0.0
    %280 = vmatpush1.msra.mxu0 0.0
    %281 = vmatprep.subr.mxu0 0.0
    %282 = vmatpush1.msra.mxu0 0.0
    %283 = vmatprep.subr.mxu0 0.0
    %284 = vmatpush1.msra.mxu0 0.0
    %285 = vmatprep.subr.mxu0 0.0
    %286 = vmatpush1.msra.mxu0 0.0
    %287 = vmatprep.subr.mxu0 0.0
    %288 = vmatpush1.msra.mxu0 0.0
    %289 = vmatprep.subr.mxu0 0.0
    %290 = vmatpush1.msra.mxu0 0.0
    %291 = vmatprep.subr.mxu0 0.0
    %292 = vmatpush1.msra.mxu0 0.0
    %293 = vmatprep.subr.mxu0 0.0
    %294 = vmatpush1.msra.mxu0 0.0
    %295 = vmatprep.subr.mxu0 0.0
    %296 = vmatpush1.msra.mxu0 0.0
    %297 = vmatprep.subr.mxu0 0.0
    %298 = vmatpush1.msra.mxu0 0.0
    %299 = vmatprep.subr.mxu0 0.0
    %300 = vmatpush1.msra.mxu0 0.0
    %301 = vmatprep.mubr.f32.mxu0 0.0
    %302 = vmatmul.mubr.f32.gmra.mrb[0].mxu0 %v220
    %v303 = vpop.f32.mrb[0].mxu0
    %v304 = vadd.f32 0.0, %v303
    %v305 = vpop.f32.mrb[0].mxu0
    %306 = vmatprep.mubr.f32.mxu0 0.0
    %307 = vmatmul.mubr.f32.gmra.mrb[0].mxu0 %v223
    %v308 = vpop.f32.mrb[0].mxu0
    %v309 = vadd.f32 0.0, %v308
    %v310 = vpop.f32.mrb[0].mxu0
    %311 = vmatprep.mubr.f32.mxu0 0.0
    %312 = vmatmul.mubr.f32.gmra.mrb[0].mxu0 %v226
    %v313 = vpop.f32.mrb[0].mxu0
    %v314 = vadd.f32 0.0, %v313
    %v315 = vpop.f32.mrb[0].mxu0
    %316 = vmatprep.mubr.f32.mxu0 0.0
    %317 = vmatmul.mubr.f32.gmra.mrb[0].mxu0 %v229
    %v318 = vpop.f32.mrb[0].mxu0
    %v319 = vadd.f32 0.0, %v318
    %v320 = vpop.f32.mrb[0].mxu0
    %321 = vmatprep.mubr.f32.mxu0 0.0
    %322 = vmatmul.mubr.f32.gmra.mrb[0].mxu0 %v232
    %v323 = vpop.f32.mrb[0].mxu0
    %v324 = vadd.f32 0.0, %v323
    %v325 = vpop.f32.mrb[0].mxu0
    %326 = vmatprep.mubr.f32.mxu0 0.0
    %327 = vmatmul.mubr.f32.gmra.mrb[0].mxu0 %v235
    %v328 = vpop.f32.mrb[0].mxu0
    %v329 = vadd.f32 0.0, %v328
    %v330 = vpop.f32.mrb[0].mxu0
    %331 = vdwg.mxu0
    %338 = vrot.lane.b32.xlu0 %v304, 96
    %v339 = vpop.permute.xlu0 %338
    %340 = vrot.lane.b32.xlu0 %v309, 96
    %v341 = vpop.permute.xlu0 %340
    %342 = vrot.lane.b32.xlu0 %v314, 96
    %v343 = vpop.permute.xlu0 %342
    %344 = vrot.lane.b32.xlu0 %v319, 96
    %v345 = vpop.permute.xlu0 %344
    %346 = vrot.lane.b32.xlu0 %v324, 96
    %v347 = vpop.permute.xlu0 %346
    %348 = vrot.lane.b32.xlu0 %v329, 96
    %v349 = vpop.permute.xlu0 %348
    %vm356 = vcmask 392192
    %v358 = vsel %vm356, %v73, 0
    %v361 = vsel %vm356, %v74, 0
    %v364 = vsel %vm356, %v75, 0
    %v367 = vsel %vm356, %v76, 0
    %v370 = vsel %vm356, %v77, 0
    %v373 = vsel %vm356, %v78, 0
    %375 = vmatprep.subr.mxu0 0.0
    %376 = vmatpush1.msra.mxu0 %v304
    %377 = vmatprep.subr.mxu0 0.0
    %378 = vmatpush1.msra.mxu0 %v309
    %379 = vmatprep.subr.mxu0 0.0
    %380 = vmatpush1.msra.mxu0 %v314
    %381 = vmatprep.subr.mxu0 0.0
    %382 = vmatpush1.msra.mxu0 %v319
    %383 = vmatprep.subr.mxu0 0.0
    %384 = vmatpush1.msra.mxu0 %v324
    %385 = vmatprep.subr.mxu0 0.0
    %386 = vmatpush1.msra.mxu0 %v329
    %387 = vmatprep.subr.mxu0 0.0
    %388 = vmatpush1.msra.mxu0 0.0
    %389 = vmatprep.subr.mxu0 0.0
    %390 = vmatpush1.msra.mxu0 0.0
    %391 = vmatprep.subr.mxu0 0.0
    %392 = vmatpush1.msra.mxu0 0.0
    %393 = vmatprep.subr.mxu0 0.0
    %394 = vmatpush1.msra.mxu0 0.0
    %395 = vmatprep.subr.mxu0 0.0
    %396 = vmatpush1.msra.mxu0 0.0
    %397 = vmatprep.subr.mxu0 0.0
    %398 = vmatpush1.msra.mxu0 0.0
    %399 = vmatprep.subr.mxu0 0.0
    %400 = vmatpush1.msra.mxu0 0.0
    %401 = vmatprep.subr.mxu0 0.0
    %402 = vmatpush1.msra.mxu0 0.0
    %403 = vmatprep.subr.mxu0 0.0
    %404 = vmatpush1.msra.mxu0 0.0
    %405 = vmatprep.subr.mxu0 0.0
    %406 = vmatpush1.msra.mxu0 0.0
    %407 = vmatprep.subr.mxu0 0.0
    %408 = vmatpush1.msra.mxu0 0.0
    %409 = vmatprep.subr.mxu0 0.0
    %410 = vmatpush1.msra.mxu0 0.0
    %411 = vmatprep.subr.mxu0 0.0
    %412 = vmatpush1.msra.mxu0 0.0
    %413 = vmatprep.subr.mxu0 0.0
    %414 = vmatpush1.msra.mxu0 0.0
    %415 = vmatprep.subr.mxu0 0.0
    %416 = vmatpush1.msra.mxu0 0.0
    %417 = vmatprep.subr.mxu0 0.0
    %418 = vmatpush1.msra.mxu0 0.0
    %419 = vmatprep.subr.mxu0 0.0
    %420 = vmatpush1.msra.mxu0 0.0
    %421 = vmatprep.subr.mxu0 0.0
    %422 = vmatpush1.msra.mxu0 0.0
    %423 = vmatprep.subr.mxu0 0.0
    %424 = vmatpush1.msra.mxu0 0.0
    %425 = vmatprep.subr.mxu0 0.0
    %426 = vmatpush1.msra.mxu0 0.0
    %427 = vmatprep.subr.mxu0 0.0
    %428 = vmatpush1.msra.mxu0 0.0
    %429 = vmatprep.subr.mxu0 0.0
    %430 = vmatpush1.msra.mxu0 0.0
    %431 = vmatprep.subr.mxu0 0.0
    %432 = vmatpush1.msra.mxu0 0.0
    %433 = vmatprep.subr.mxu0 0.0
    %434 = vmatpush1.msra.mxu0 0.0
    %435 = vmatprep.subr.mxu0 0.0
    %436 = vmatpush1.msra.mxu0 0.0
    %437 = vmatprep.subr.mxu0 0.0
    %438 = vmatpush1.msra.mxu0 0.0
    %439 = vmatprep.mubr.f32.mxu0 0.0
    %440 = vmatmul.mubr.f32.gmra.mrb[0].mxu0 %v358
    %v441 = vpop.f32.mrb[0].mxu0
    %v442 = vadd.f32 %v339, %v441
    %v443 = vpop.f32.mrb[0].mxu0
    %444 = vmatprep.mubr.f32.mxu0 0.0
    %445 = vmatmul.mubr.f32.gmra.mrb[0].mxu0 %v361
    %v446 = vpop.f32.mrb[0].mxu0
    %v447 = vadd.f32 %v341, %v446
    %v448 = vpop.f32.mrb[0].mxu0
    %449 = vmatprep.mubr.f32.mxu0 0.0
    %450 = vmatmul.mubr.f32.gmra.mrb[0].mxu0 %v364
    %v451 = vpop.f32.mrb[0].mxu0
    %v452 = vadd.f32 %v343, %v451
    %v453 = vpop.f32.mrb[0].mxu0
    %454 = vmatprep.mubr.f32.mxu0 0.0
    %455 = vmatmul.mubr.f32.gmra.mrb[0].mxu0 %v367
    %v456 = vpop.f32.mrb[0].mxu0
    %v457 = vadd.f32 %v345, %v456
    %v458 = vpop.f32.mrb[0].mxu0
    %459 = vmatprep.mubr.f32.mxu0 0.0
    %460 = vmatmul.mubr.f32.gmra.mrb[0].mxu0 %v370
    %v461 = vpop.f32.mrb[0].mxu0
    %v462 = vadd.f32 %v347, %v461
    %v463 = vpop.f32.mrb[0].mxu0
    %464 = vmatprep.mubr.f32.mxu0 0.0
    %465 = vmatmul.mubr.f32.gmra.mrb[0].mxu0 %v373
    %v466 = vpop.f32.mrb[0].mxu0
    %v467 = vadd.f32 %v349, %v466
    %v468 = vpop.f32.mrb[0].mxu0
    %469 = vdwg.mxu0
    %v471 = vlaneseq
    %v472 = vshrl.u32 %v471, 7
    %v473 = vsub.s32 0, %v472
    %v474 = vrot.slane %v86, %v473
    %v476 = vadd.f32 %v442, %v474
    %v477 = vadd.f32 %v447, %v474
    %v478 = vadd.f32 %v452, %v474
    %v479 = vadd.f32 %v457, %v474
    %v480 = vadd.f32 %v462, %v474
    %v481 = vadd.f32 %v467, %v474
    %v482 = vmax.f32 %v476, 0.0
    %v483 = vmax.f32 %v477, 0.0
    %v484 = vmax.f32 %v478, 0.0
    %v485 = vmax.f32 %v479, 0.0
    %v486 = vmax.f32 %v480, 0.0
    %v487 = vmax.f32 %v481, 0.0
    %v489 = vsel %vm218, %v482, 0
    %v492 = vsel %vm218, %v483, 0
    %v495 = vsel %vm218, %v484, 0
    %v498 = vsel %vm218, %v485, 0
    %v501 = vsel %vm218, %v486, 0
    %v504 = vsel %vm218, %v487, 0
    %506 = vmatprep.subr.mxu0 0.0
    %507 = vmatpush1.msra.mxu0 %v82
    %508 = vmatprep.subr.mxu0 0.0
    %509 = vmatpush1.msra.mxu0 %v83
    %510 = vmatprep.subr.mxu0 0.0
    %511 = vmatpush1.msra.mxu0 %v84
    %512 = vmatprep.subr.mxu0 0.0
    %513 = vmatpush1.msra.mxu0 %v85
    %514 = vmatprep.subr.mxu0 0.0
    %515 = vmatpush1.msra.mxu0 0.0
    %516 = vmatprep.subr.mxu0 0.0
    %517 = vmatpush1.msra.mxu0 0.0
    %518 = vmatprep.subr.mxu0 0.0
    %519 = vmatpush1.msra.mxu0 0.0
    %520 = vmatprep.subr.mxu0 0.0
    %521 = vmatpush1.msra.mxu0 0.0
    %522 = vmatprep.subr.mxu0 0.0
    %523 = vmatpush1.msra.mxu0 0.0
    %524 = vmatprep.subr.mxu0 0.0
    %525 = vmatpush1.msra.mxu0 0.0
    %526 = vmatprep.subr.mxu0 0.0
    %527 = vmatpush1.msra.mxu0 0.0
    %528 = vmatprep.subr.mxu0 0.0
    %529 = vmatpush1.msra.mxu0 0.0
    %530 = vmatprep.subr.mxu0 0.0
    %531 = vmatpush1.msra.mxu0 0.0
    %532 = vmatprep.subr.mxu0 0.0
    %533 = vmatpush1.msra.mxu0 0.0
    %534 = vmatprep.subr.mxu0 0.0
    %535 = vmatpush1.msra.mxu0 0.0
    %536 = vmatprep.subr.mxu0 0.0
    %537 = vmatpush1.msra.mxu0 0.0
    %538 = vmatprep.subr.mxu0 0.0
    %539 = vmatpush1.msra.mxu0 0.0
    %540 = vmatprep.subr.mxu0 0.0
    %541 = vmatpush1.msra.mxu0 0.0
    %542 = vmatprep.subr.mxu0 0.0
    %543 = vmatpush1.msra.mxu0 0.0
    %544 = vmatprep.subr.mxu0 0.0
    %545 = vmatpush1.msra.mxu0 0.0
    %546 = vmatprep.subr.mxu0 0.0
    %547 = vmatpush1.msra.mxu0 0.0
    %548 = vmatprep.subr.mxu0 0.0
    %549 = vmatpush1.msra.mxu0 0.0
    %550 = vmatprep.subr.mxu0 0.0
    %551 = vmatpush1.msra.mxu0 0.0
    %552 = vmatprep.subr.mxu0 0.0
    %553 = vmatpush1.msra.mxu0 0.0
    %554 = vmatprep.subr.mxu0 0.0
    %555 = vmatpush1.msra.mxu0 0.0
    %556 = vmatprep.subr.mxu0 0.0
    %557 = vmatpush1.msra.mxu0 0.0
    %558 = vmatprep.subr.mxu0 0.0
    %559 = vmatpush1.msra.mxu0 0.0
    %560 = vmatprep.subr.mxu0 0.0
    %561 = vmatpush1.msra.mxu0 0.0
    %562 = vmatprep.subr.mxu0 0.0
    %563 = vmatpush1.msra.mxu0 0.0
    %564 = vmatprep.subr.mxu0 0.0
    %565 = vmatpush1.msra.mxu0 0.0
    %566 = vmatprep.subr.mxu0 0.0
    %567 = vmatpush1.msra.mxu0 0.0
    %568 = vmatprep.subr.mxu0 0.0
    %569 = vmatpush1.msra.mxu0 0.0
    %570 = vmatprep.mubr.f32.mxu0 0.0
    %571 = vmatmul.mubr.f32.gmra.mrb[0].mxu0 %v489
    %v572 = vpop.f32.mrb[0].mxu0
    %v573 = vadd.f32 0.0, %v572
    %v574 = vpop.f32.mrb[0].mxu0
    %575 = vmatprep.mubr.f32.mxu0 0.0
    %576 = vmatmul.mubr.f32.gmra.mrb[0].mxu0 %v492
    %v577 = vpop.f32.mrb[0].mxu0
    %v578 = vadd.f32 0.0, %v577
    %v579 = vpop.f32.mrb[0].mxu0
    %580 = vmatprep.mubr.f32.mxu0 0.0
    %581 = vmatmul.mubr.f32.gmra.mrb[0].mxu0 %v495
    %v582 = vpop.f32.mrb[0].mxu0
    %v583 = vadd.f32 0.0, %v582
    %v584 = vpop.f32.mrb[0].mxu0
    %585 = vmatprep.mubr.f32.mxu0 0.0
    %586 = vmatmul.mubr.f32.gmra.mrb[0].mxu0 %v498
    %v587 = vpop.f32.mrb[0].mxu0
    %v588 = vadd.f32 0.0, %v587
    %v589 = vpop.f32.mrb[0].mxu0
    %590 = vmatprep.mubr.f32.mxu0 0.0
    %591 = vmatmul.mubr.f32.gmra.mrb[0].mxu0 %v501
    %v592 = vpop.f32.mrb[0].mxu0
    %v593 = vadd.f32 0.0, %v592
    %v594 = vpop.f32.mrb[0].mxu0
    %595 = vmatprep.mubr.f32.mxu0 0.0
    %596 = vmatmul.mubr.f32.gmra.mrb[0].mxu0 %v504
    %v597 = vpop.f32.mrb[0].mxu0
    %v598 = vadd.f32 0.0, %v597
    %v599 = vpop.f32.mrb[0].mxu0
    %600 = vdwg.mxu0
    %607 = vrot.lane.b32.xlu0 %v573, 96
    %v608 = vpop.permute.xlu0 %607
    %609 = vrot.lane.b32.xlu0 %v578, 96
    %v610 = vpop.permute.xlu0 %609
    %611 = vrot.lane.b32.xlu0 %v583, 96
    %v612 = vpop.permute.xlu0 %611
    %613 = vrot.lane.b32.xlu0 %v588, 96
    %v614 = vpop.permute.xlu0 %613
    %615 = vrot.lane.b32.xlu0 %v593, 96
    %v616 = vpop.permute.xlu0 %615
    %617 = vrot.lane.b32.xlu0 %v598, 96
    %v618 = vpop.permute.xlu0 %617
    %625 = vmatprep.subr.mxu0 0.0
    %626 = vmatpush1.msra.mxu0 %v573
    %627 = vmatprep.subr.mxu0 0.0
    %628 = vmatpush1.msra.mxu0 %v578
    %629 = vmatprep.subr.mxu0 0.0
    %630 = vmatpush1.msra.mxu0 %v583
    %631 = vmatprep.subr.mxu0 0.0
    %632 = vmatpush1.msra.mxu0 %v588
    %633 = vmatprep.subr.mxu0 0.0
    %634 = vmatpush1.msra.mxu0 %v593
    %635 = vmatprep.subr.mxu0 0.0
    %636 = vmatpush1.msra.mxu0 %v598
    %637 = vmatprep.subr.mxu0 0.0
    %638 = vmatpush1.msra.mxu0 0.0
    %639 = vmatprep.subr.mxu0 0.0
    %640 = vmatpush1.msra.mxu0 0.0
    %641 = vmatprep.subr.mxu0 0.0
    %642 = vmatpush1.msra.mxu0 0.0
    %643 = vmatprep.subr.mxu0 0.0
    %644 = vmatpush1.msra.mxu0 0.0
    %645 = vmatprep.subr.mxu0 0.0
    %646 = vmatpush1.msra.mxu0 0.0
    %647 = vmatprep.subr.mxu0 0.0
    %648 = vmatpush1.msra.mxu0 0.0
    %649 = vmatprep.subr.mxu0 0.0
    %650 = vmatpush1.msra.mxu0 0.0
    %651 = vmatprep.subr.mxu0 0.0
    %652 = vmatpush1.msra.mxu0 0.0
    %653 = vmatprep.subr.mxu0 0.0
    %654 = vmatpush1.msra.mxu0 0.0
    %655 = vmatprep.subr.mxu0 0.0
    %656 = vmatpush1.msra.mxu0 0.0
    %657 = vmatprep.subr.mxu0 0.0
    %658 = vmatpush1.msra.mxu0 0.0
    %659 = vmatprep.subr.mxu0 0.0
    %660 = vmatpush1.msra.mxu0 0.0
    %661 = vmatprep.subr.mxu0 0.0
    %662 = vmatpush1.msra.mxu0 0.0
    %663 = vmatprep.subr.mxu0 0.0
    %664 = vmatpush1.msra.mxu0 0.0
    %665 = vmatprep.subr.mxu0 0.0
    %666 = vmatpush1.msra.mxu0 0.0
    %667 = vmatprep.subr.mxu0 0.0
    %668 = vmatpush1.msra.mxu0 0.0
    %669 = vmatprep.subr.mxu0 0.0
    %670 = vmatpush1.msra.mxu0 0.0
    %671 = vmatprep.subr.mxu0 0.0
    %672 = vmatpush1.msra.mxu0 0.0
    %673 = vmatprep.subr.mxu0 0.0
    %674 = vmatpush1.msra.mxu0 0.0
    %675 = vmatprep.subr.mxu0 0.0
    %676 = vmatpush1.msra.mxu0 0.0
    %677 = vmatprep.subr.mxu0 0.0
    %678 = vmatpush1.msra.mxu0 0.0
    %679 = vmatprep.subr.mxu0 0.0
    %680 = vmatpush1.msra.mxu0 0.0
    %681 = vmatprep.subr.mxu0 0.0
    %682 = vmatpush1.msra.mxu0 0.0
    %683 = vmatprep.subr.mxu0 0.0
    %684 = vmatpush1.msra.mxu0 0.0
    %685 = vmatprep.subr.mxu0 0.0
    %686 = vmatpush1.msra.mxu0 0.0
    %687 = vmatprep.subr.mxu0 0.0
    %688 = vmatpush1.msra.mxu0 0.0
    %689 = vmatprep.mubr.f32.mxu0 0.0
    %690 = vmatmul.mubr.f32.gmra.mrb[0].mxu0 %v358
    %v691 = vpop.f32.mrb[0].mxu0
    %v692 = vadd.f32 %v608, %v691
    %v693 = vpop.f32.mrb[0].mxu0
    %694 = vmatprep.mubr.f32.mxu0 0.0
    %695 = vmatmul.mubr.f32.gmra.mrb[0].mxu0 %v361
    %v696 = vpop.f32.mrb[0].mxu0
    %v697 = vadd.f32 %v610, %v696
    %v698 = vpop.f32.mrb[0].mxu0
    %699 = vmatprep.mubr.f32.mxu0 0.0
    %700 = vmatmul.mubr.f32.gmra.mrb[0].mxu0 %v364
    %v701 = vpop.f32.mrb[0].mxu0
    %v702 = vadd.f32 %v612, %v701
    %v703 = vpop.f32.mrb[0].mxu0
    %704 = vmatprep.mubr.f32.mxu0 0.0
    %705 = vmatmul.mubr.f32.gmra.mrb[0].mxu0 %v367
    %v706 = vpop.f32.mrb[0].mxu0
    %v707 = vadd.f32 %v614, %v706
    %v708 = vpop.f32.mrb[0].mxu0
    %709 = vmatprep.mubr.f32.mxu0 0.0
    %710 = vmatmul.mubr.f32.gmra.mrb[0].mxu0 %v370
    %v711 = vpop.f32.mrb[0].mxu0
    %v712 = vadd.f32 %v616, %v711
    %v713 = vpop.f32.mrb[0].mxu0
    %714 = vmatprep.mubr.f32.mxu0 0.0
    %715 = vmatmul.mubr.f32.gmra.mrb[0].mxu0 %v373
    %v716 = vpop.f32.mrb[0].mxu0
    %v717 = vadd.f32 %v618, %v716
    %v718 = vpop.f32.mrb[0].mxu0
    %719 = vdwg.mxu0
    %v720 = vadd.f32 %v692, %v474
    %v721 = vadd.f32 %v697, %v474
    %v722 = vadd.f32 %v702, %v474
    %v723 = vadd.f32 %v707, %v474
    %v724 = vadd.f32 %v712, %v474
    %v725 = vadd.f32 %v717, %v474
    %v726 = vmax.f32 %v720, 0.0
    %v727 = vmax.f32 %v721, 0.0
    %v728 = vmax.f32 %v722, 0.0
    %v729 = vmax.f32 %v723, 0.0
    %v730 = vmax.f32 %v724, 0.0
    %v731 = vmax.f32 %v725, 0.0
    %v733 = vlaneseq
    %v734 = vshrl.u32 %v733, 7
    %v735 = vsub.s32 0, %v734
    %v736 = vrot.slane %v91, %v735
    %v739 = vsel %vm218, %v726, 0
    %v742 = vsel %vm218, %v727, 0
    %v745 = vsel %vm218, %v728, 0
    %v748 = vsel %vm218, %v729, 0
    %v751 = vsel %vm218, %v730, 0
    %v754 = vsel %vm218, %v731, 0
    %756 = vmatprep.subr.mxu0 0.0
    %757 = vmatpush1.msra.mxu0 %v87
    %758 = vmatprep.subr.mxu0 0.0
    %759 = vmatpush1.msra.mxu0 %v88
    %760 = vmatprep.subr.mxu0 0.0
    %761 = vmatpush1.msra.mxu0 %v89
    %762 = vmatprep.subr.mxu0 0.0
    %763 = vmatpush1.msra.mxu0 %v90
    %764 = vmatprep.subr.mxu0 0.0
    %765 = vmatpush1.msra.mxu0 0.0
    %766 = vmatprep.subr.mxu0 0.0
    %767 = vmatpush1.msra.mxu0 0.0
    %768 = vmatprep.subr.mxu0 0.0
    %769 = vmatpush1.msra.mxu0 0.0
    %770 = vmatprep.subr.mxu0 0.0
    %771 = vmatpush1.msra.mxu0 0.0
    %772 = vmatprep.subr.mxu0 0.0
    %773 = vmatpush1.msra.mxu0 0.0
    %774 = vmatprep.subr.mxu0 0.0
    %775 = vmatpush1.msra.mxu0 0.0
    %776 = vmatprep.subr.mxu0 0.0
    %777 = vmatpush1.msra.mxu0 0.0
    %778 = vmatprep.subr.mxu0 0.0
    %779 = vmatpush1.msra.mxu0 0.0
    %780 = vmatprep.subr.mxu0 0.0
    %781 = vmatpush1.msra.mxu0 0.0
    %782 = vmatprep.subr.mxu0 0.0
    %783 = vmatpush1.msra.mxu0 0.0
    %784 = vmatprep.subr.mxu0 0.0
    %785 = vmatpush1.msra.mxu0 0.0
    %786 = vmatprep.subr.mxu0 0.0
    %787 = vmatpush1.msra.mxu0 0.0
    %788 = vmatprep.subr.mxu0 0.0
    %789 = vmatpush1.msra.mxu0 0.0
    %790 = vmatprep.subr.mxu0 0.0
    %791 = vmatpush1.msra.mxu0 0.0
    %792 = vmatprep.subr.mxu0 0.0
    %793 = vmatpush1.msra.mxu0 0.0
    %794 = vmatprep.subr.mxu0 0.0
    %795 = vmatpush1.msra.mxu0 0.0
    %796 = vmatprep.subr.mxu0 0.0
    %797 = vmatpush1.msra.mxu0 0.0
    %798 = vmatprep.subr.mxu0 0.0
    %799 = vmatpush1.msra.mxu0 0.0
    %800 = vmatprep.subr.mxu0 0.0
    %801 = vmatpush1.msra.mxu0 0.0
    %802 = vmatprep.subr.mxu0 0.0
    %803 = vmatpush1.msra.mxu0 0.0
    %804 = vmatprep.subr.mxu0 0.0
    %805 = vmatpush1.msra.mxu0 0.0
    %806 = vmatprep.subr.mxu0 0.0
    %807 = vmatpush1.msra.mxu0 0.0
    %808 = vmatprep.subr.mxu0 0.0
    %809 = vmatpush1.msra.mxu0 0.0
    %810 = vmatprep.subr.mxu0 0.0
    %811 = vmatpush1.msra.mxu0 0.0
    %812 = vmatprep.subr.mxu0 0.0
    %813 = vmatpush1.msra.mxu0 0.0
    %814 = vmatprep.subr.mxu0 0.0
    %815 = vmatpush1.msra.mxu0 0.0
    %816 = vmatprep.subr.mxu0 0.0
    %817 = vmatpush1.msra.mxu0 0.0
    %818 = vmatprep.subr.mxu0 0.0
    %819 = vmatpush1.msra.mxu0 0.0
    %820 = vmatprep.mubr.f32.mxu0 0.0
    %821 = vmatmul.mubr.f32.gmra.mrb[0].mxu0 %v739
    %v822 = vpop.f32.mrb[0].mxu0
    %v823 = vadd.f32 %v736, %v822
    %v824 = vpop.f32.mrb[0].mxu0
    %825 = vmatprep.mubr.f32.mxu0 0.0
    %826 = vmatmul.mubr.f32.gmra.mrb[0].mxu0 %v742
    %v827 = vpop.f32.mrb[0].mxu0
    %v828 = vadd.f32 %v736, %v827
    %v829 = vpop.f32.mrb[0].mxu0
    %830 = vmatprep.mubr.f32.mxu0 0.0
    %831 = vmatmul.mubr.f32.gmra.mrb[0].mxu0 %v745
    %v832 = vpop.f32.mrb[0].mxu0
    %v833 = vadd.f32 %v736, %v832
    %v834 = vpop.f32.mrb[0].mxu0
    %835 = vmatprep.mubr.f32.mxu0 0.0
    %836 = vmatmul.mubr.f32.gmra.mrb[0].mxu0 %v748
    %v837 = vpop.f32.mrb[0].mxu0
    %v838 = vadd.f32 %v736, %v837
    %v839 = vpop.f32.mrb[0].mxu0
    %840 = vmatprep.mubr.f32.mxu0 0.0
    %841 = vmatmul.mubr.f32.gmra.mrb[0].mxu0 %v751
    %v842 = vpop.f32.mrb[0].mxu0
    %v843 = vadd.f32 %v736, %v842
    %v844 = vpop.f32.mrb[0].mxu0
    %845 = vmatprep.mubr.f32.mxu0 0.0
    %846 = vmatmul.mubr.f32.gmra.mrb[0].mxu0 %v754
    %v847 = vpop.f32.mrb[0].mxu0
    %v848 = vadd.f32 %v736, %v847
    %v849 = vpop.f32.mrb[0].mxu0
    %850 = vdwg.mxu0
    %v851 = vxor.u32 %v823, 2147483648
    %v852 = vxor.u32 %v828, 2147483648
    %v853 = vxor.u32 %v833, 2147483648
    %v854 = vxor.u32 %v838, 2147483648
    %v855 = vxor.u32 %v843, 2147483648
    %v856 = vxor.u32 %v848, 2147483648
    %v857 = vmul.f32 %v851, 1.442695
    %v858 = vpow.pop %v857
    %v859 = vmul.f32 %v852, 1.442695
    %v860 = vpow.pop %v859
    %v861 = vmul.f32 %v853, 1.442695
    %v862 = vpow.pop %v861
    %v863 = vmul.f32 %v854, 1.442695
    %v864 = vpow.pop %v863
    %v865 = vmul.f32 %v855, 1.442695
    %v866 = vpow.pop %v865
    %v867 = vmul.f32 %v856, 1.442695
    %v868 = vpow.pop %v867
    %v869 = vadd.f32 %v858, 1.0
    %v870 = vadd.f32 %v860, 1.0
    %v871 = vadd.f32 %v862, 1.0
    %v872 = vadd.f32 %v864, 1.0
    %v873 = vadd.f32 %v866, 1.0
    %v874 = vadd.f32 %v868, 1.0
    %v875 = vrcp.pop %v869
    %v876 = vmul.f32 1.0, %v875
    %v877 = vrcp.pop %v870
    %v878 = vmul.f32 1.0, %v877
    %v879 = vrcp.pop %v871
    %v880 = vmul.f32 1.0, %v879
    %v881 = vrcp.pop %v872
    %v882 = vmul.f32 1.0, %v881
    %v883 = vrcp.pop %v873
    %v884 = vmul.f32 1.0, %v883
    %v885 = vrcp.pop %v874
    %v886 = vmul.f32 1.0, %v885
    %893 = vrot.lane.b32.xlu0 %v823, 96
    %v894 = vpop.permute.xlu0 %893
    %895 = vrot.lane.b32.xlu0 %v828, 96
    %v896 = vpop.permute.xlu0 %895
    %897 = vrot.lane.b32.xlu0 %v833, 96
    %v898 = vpop.permute.xlu0 %897
    %899 = vrot.lane.b32.xlu0 %v838, 96
    %v900 = vpop.permute.xlu0 %899
    %901 = vrot.lane.b32.xlu0 %v843, 96
    %v902 = vpop.permute.xlu0 %901
    %903 = vrot.lane.b32.xlu0 %v848, 96
    %v904 = vpop.permute.xlu0 %903
    %v911 = vmul.f32 %v876, %v894
    %v912 = vmul.f32 %v878, %v896
    %v913 = vmul.f32 %v880, %v898
    %v914 = vmul.f32 %v882, %v900
    %v915 = vmul.f32 %v884, %v902
    %v916 = vmul.f32 %v886, %v904
    %v917 = vld [vmem:[%s9] sm:$0xff]
    %v918 = vld [vmem:[%s10] sm:$0xff]
    %v920 = vsel %vm356, %v917, 0
    %922 = vmatprep.subr.mxu0 0.0
    %923 = vmatpush1.msra.mxu0 %v911
    %924 = vmatprep.subr.mxu0 0.0
    %925 = vmatpush1.msra.mxu0 %v912
    %926 = vmatprep.subr.mxu0 0.0
    %927 = vmatpush1.msra.mxu0 %v913
    %928 = vmatprep.subr.mxu0 0.0
    %929 = vmatpush1.msra.mxu0 %v914
    %930 = vmatprep.subr.mxu0 0.0
    %931 = vmatpush1.msra.mxu0 %v915
    %932 = vmatprep.subr.mxu0 0.0
    %933 = vmatpush1.msra.mxu0 %v916
    %934 = vmatprep.subr.mxu0 0.0
    %935 = vmatpush1.msra.mxu0 0.0
    %936 = vmatprep.subr.mxu0 0.0
    %937 = vmatpush1.msra.mxu0 0.0
    %938 = vmatprep.subr.mxu0 0.0
    %939 = vmatpush1.msra.mxu0 0.0
    %940 = vmatprep.subr.mxu0 0.0
    %941 = vmatpush1.msra.mxu0 0.0
    %942 = vmatprep.subr.mxu0 0.0
    %943 = vmatpush1.msra.mxu0 0.0
    %944 = vmatprep.subr.mxu0 0.0
    %945 = vmatpush1.msra.mxu0 0.0
    %946 = vmatprep.subr.mxu0 0.0
    %947 = vmatpush1.msra.mxu0 0.0
    %948 = vmatprep.subr.mxu0 0.0
    %949 = vmatpush1.msra.mxu0 0.0
    %950 = vmatprep.subr.mxu0 0.0
    %951 = vmatpush1.msra.mxu0 0.0
    %952 = vmatprep.subr.mxu0 0.0
    %953 = vmatpush1.msra.mxu0 0.0
    %954 = vmatprep.subr.mxu0 0.0
    %955 = vmatpush1.msra.mxu0 0.0
    %956 = vmatprep.subr.mxu0 0.0
    %957 = vmatpush1.msra.mxu0 0.0
    %958 = vmatprep.subr.mxu0 0.0
    %959 = vmatpush1.msra.mxu0 0.0
    %960 = vmatprep.subr.mxu0 0.0
    %961 = vmatpush1.msra.mxu0 0.0
    %962 = vmatprep.subr.mxu0 0.0
    %963 = vmatpush1.msra.mxu0 0.0
    %964 = vmatprep.subr.mxu0 0.0
    %965 = vmatpush1.msra.mxu0 0.0
    %966 = vmatprep.subr.mxu0 0.0
    %967 = vmatpush1.msra.mxu0 0.0
    %968 = vmatprep.subr.mxu0 0.0
    %969 = vmatpush1.msra.mxu0 0.0
    %970 = vmatprep.subr.mxu0 0.0
    %971 = vmatpush1.msra.mxu0 0.0
    %972 = vmatprep.subr.mxu0 0.0
    %973 = vmatpush1.msra.mxu0 0.0
    %974 = vmatprep.subr.mxu0 0.0
    %975 = vmatpush1.msra.mxu0 0.0
    %976 = vmatprep.subr.mxu0 0.0
    %977 = vmatpush1.msra.mxu0 0.0
    %978 = vmatprep.subr.mxu0 0.0
    %979 = vmatpush1.msra.mxu0 0.0
    %980 = vmatprep.subr.mxu0 0.0
    %981 = vmatpush1.msra.mxu0 0.0
    %982 = vmatprep.subr.mxu0 0.0
    %983 = vmatpush1.msra.mxu0 0.0
    %984 = vmatprep.subr.mxu0 0.0
    %985 = vmatpush1.msra.mxu0 0.0
    %986 = vmatprep.mubr.f32.mxu0 0.0
    %987 = vmatmul.mubr.f32.gmra.mrb[0].mxu0 %v920
    %v988 = vpop.f32.mrb[0].mxu0
    %v989 = vadd.f32 %v918, %v988
    %v990 = vpop.f32.mrb[0].mxu0
    %991 = vdwg.mxu0
    %v992 = vld [vmem:[%s0] sm:$0xff]
    %v993 = vlaneseq
    %v994 = vand.u32 %v993, 127
    %995 = vset.pattern.permute.xlu0 0
    %996 = vperm.xlu0 %995, %v992
    %v997 = vpop.permute.xlu0 %996
    %vm998 = vcmp.eq.s32.totalorder %v994, %v997
    %v999 = vsel %vm998, 1, 0
    %v1000 = vcvt.s32.f32 %v999
    %vm1001 = vcmask 64512
    %v1003 = vsel %vm1001, %v1000, 0
    %1005 = vmatprep.subr.mxu0 0.0
    %1006 = vmatpush1.msra.mxu0 %v989
    %1007 = vmatprep.subr.mxu0 0.0
    %1008 = vmatpush1.msra.mxu0 0.0
    %1009 = vmatprep.subr.mxu0 0.0
    %1010 = vmatpush1.msra.mxu0 0.0
    %1011 = vmatprep.subr.mxu0 0.0
    %1012 = vmatpush1.msra.mxu0 0.0
    %1013 = vmatprep.subr.mxu0 0.0
    %1014 = vmatpush1.msra.mxu0 0.0
    %1015 = vmatprep.subr.mxu0 0.0
    %1016 = vmatpush1.msra.mxu0 0.0
    %1017 = vmatprep.subr.mxu0 0.0
    %1018 = vmatpush1.msra.mxu0 0.0
    %1019 = vmatprep.subr.mxu0 0.0
    %1020 = vmatpush1.msra.mxu0 0.0
    %1021 = vmatprep.subr.mxu0 0.0
    %1022 = vmatpush1.msra.mxu0 0.0
    %1023 = vmatprep.subr.mxu0 0.0
    %1024 = vmatpush1.msra.mxu0 0.0
    %1025 = vmatprep.subr.mxu0 0.0
    %1026 = vmatpush1.msra.mxu0 0.0
    %1027 = vmatprep.subr.mxu0 0.0
    %1028 = vmatpush1.msra.mxu0 0.0
    %1029 = vmatprep.subr.mxu0 0.0
    %1030 = vmatpush1.msra.mxu0 0.0
    %1031 = vmatprep.subr.mxu0 0.0
    %1032 = vmatpush1.msra.mxu0 0.0
    %1033 = vmatprep.subr.mxu0 0.0
    %1034 = vmatpush1.msra.mxu0 0.0
    %1035 = vmatprep.subr.mxu0 0.0
    %1036 = vmatpush1.msra.mxu0 0.0
    %1037 = vmatprep.subr.mxu0 0.0
    %1038 = vmatpush1.msra.mxu0 0.0
    %1039 = vmatprep.subr.mxu0 0.0
    %1040 = vmatpush1.msra.mxu0 0.0
    %1041 = vmatprep.subr.mxu0 0.0
    %1042 = vmatpush1.msra.mxu0 0.0
    %1043 = vmatprep.subr.mxu0 0.0
    %1044 = vmatpush1.msra.mxu0 0.0
    %1045 = vmatprep.subr.mxu0 0.0
    %1046 = vmatpush1.msra.mxu0 0.0
    %1047 = vmatprep.subr.mxu0 0.0
    %1048 = vmatpush1.msra.mxu0 0.0
    %1049 = vmatprep.subr.mxu0 0.0
    %1050 = vmatpush1.msra.mxu0 0.0
    %1051 = vmatprep.subr.mxu0 0.0
    %1052 = vmatpush1.msra.mxu0 0.0
    %1053 = vmatprep.subr.mxu0 0.0
    %1054 = vmatpush1.msra.mxu0 0.0
    %1055 = vmatprep.subr.mxu0 0.0
    %1056 = vmatpush1.msra.mxu0 0.0
    %1057 = vmatprep.subr.mxu0 0.0
    %1058 = vmatpush1.msra.mxu0 0.0
    %1059 = vmatprep.subr.mxu0 0.0
    %1060 = vmatpush1.msra.mxu0 0.0
    %1061 = vmatprep.subr.mxu0 0.0
    %1062 = vmatpush1.msra.mxu0 0.0
    %1063 = vmatprep.subr.mxu0 0.0
    %1064 = vmatpush1.msra.mxu0 0.0
    %1065 = vmatprep.subr.mxu0 0.0
    %1066 = vmatpush1.msra.mxu0 0.0
    %1067 = vmatprep.subr.mxu0 0.0
    %1068 = vmatpush1.msra.mxu0 0.0
    %1069 = vmatprep.mubr.f32.mxu0 0.0
    %1070 = vmatmul.mubr.f32.gmra.mrb[0].mxu0 %v1003
    %v1071 = vpop.f32.mrb[0].mxu0
    %v1072 = vadd.f32 0.0, %v1071
    %v1073 = vpop.f32.mrb[0].mxu0
    %1074 = vdwg.mxu0
    %1075 = vst.msk [vmem:[#allocation7] sm:$0xff] %vm218, %v1072
    // Predicated region
    $region54: #{symbol_gnn_embedder.1} parent=1 // pred_check
      _
    $region55: #{symbol_gnn_embedder.1} parent=1 // pred_check_branch
      %1077 = sbr.rel (0) target = $region57
    $region56: #{symbol_gnn_embedder.1} parent=1 // pred_region
      %s1079 = ssub.s32 128, 128
      %1080 = vsyncadd [#allocation4], %s1079
      %s1082 = sshll.u32 [#allocation7], 4
      %s1083 = int_to_ptr.vmem [resolvable:$true] %s1082
      %1085 = dma.vmem_to_hbm [thread:$0]  %s1083, 128, %s11, [#allocation4]
    $region57: #{symbol_gnn_embedder.1} parent=1 // pred_fallthru
      _
    // Predicated region
    $region58: #{symbol_gnn_embedder.1} parent=1 // pred_check
      _
    $region59: #{symbol_gnn_embedder.1} parent=1 // pred_check_branch
      %1087 = sbr.rel (0) target = $region61
    $region60: #{symbol_gnn_embedder.1} parent=1 // pred_region
      %1088 = dma.done [#allocation4], 128
    $region61: #{symbol_gnn_embedder.1} parent=1 // pred_fallthru
      _
    %1089 = vsyncpa [#allocation3], 1
    %1090 = vsyncpa [#allocation6], 1
    %1091 = vsyncpa [#allocation4], 1

</llo_original>
